<compile_context>
chip_gen: v7x
topology: tpu7x:2x2x1
jax: 0.10.0
libtpu: 0.0.40
codegen_flags: <defaults>
</compile_context>

<pallas_src>
import functools

import jax
import jax.numpy as jnp
from jax.experimental import pallas as pl
from jax.experimental.pallas import tpu as pltpu


def make_freq_bands(n_freqs: int, logscale: bool = True):
    """Static Python floats matching the torch.linspace-based freq_bands."""
    if n_freqs <= 0:
        return ()
    if logscale:
        return tuple(float(2.0 ** k) for k in range(n_freqs))
    if n_freqs == 1:
        return (1.0,)
    step = (2.0 ** (n_freqs - 1) - 1.0) / (n_freqs - 1)
    return tuple(float(1.0 + step * k) for k in range(n_freqs))


def _sublane_granule(dtype) -> int:
    # f32 -> 8, bf16/f16 -> 16, int8/fp8 -> 32 sublanes per native tile.
    itemsize = jnp.dtype(dtype).itemsize
    return max(8, 32 // max(1, itemsize))


def _embedding_kernel(x_ref, o_ref, *, freq_bands, logscale, reseed_every):
    """x_ref: (block_r, lanes) flat slab of input elements (fully dense).
    o_ref: (n_parts, block_r, lanes); plane 0 = x, 2k+1 = sin(f_k x),
    2k+2 = cos(f_k x)."""
    x = x_ref[...].astype(jnp.float32)        # upcast once; compute in f32
    o_ref[0] = x.astype(o_ref.dtype)          # identity part

    n = len(freq_bands)
    if n == 0:
        return

    if logscale:
        s = c = None
        for k in range(n):
            if k % reseed_every == 0:
                fx = x if freq_bands[k] == 1.0 else freq_bands[k] * x
                s, c = jnp.sin(fx), jnp.cos(fx)            # exact re-seed (EUP)
            else:
                s, c = 2.0 * s * c, 2.0 * c * c - 1.0      # double angle (VPU)
            o_ref[2 * k + 1] = s.astype(o_ref.dtype)
            o_ref[2 * k + 2] = c.astype(o_ref.dtype)
    else:
        sd = cd = None
        if n > 1 and reseed_every > 1:
            d = (freq_bands[1] - freq_bands[0]) * x        # constant band step
            sd, cd = jnp.sin(d), jnp.cos(d)                # 2 EUP ops, reused
        s = c = None
        for k in range(n):
            if k % reseed_every == 0:
                fx = x if freq_bands[k] == 1.0 else freq_bands[k] * x
                s, c = jnp.sin(fx), jnp.cos(fx)            # exact re-seed (EUP)
            else:
                s, c = s * cd + c * sd, c * cd - s * sd    # angle addition (VPU)
            o_ref[2 * k + 1] = s.astype(o_ref.dtype)
            o_ref[2 * k + 2] = c.astype(o_ref.dtype)


def embedding_forward(x, n_freqs: int, logscale: bool = True, *,
                      lanes: int = 1024,
                      block_out_bytes: int = 8 * 1024 * 1024,
                      reseed_every: int = 4,
                      out_dtype=None,
                      layout: str = "torch"):
    """Pallas equivalent of Embedding.forward(x) for x of shape (B, C).

    layout="torch"  -> (B, C*(2*n_freqs+1)), identical to the PyTorch module.
    layout="planes" -> (2*n_freqs+1, B, C) kernel-native layout (lets a fused
                       consumer absorb the channel permutation for free).
    """
    B, C = x.shape
    assert lanes % 128 == 0, "lanes must be a multiple of 128"
    assert reseed_every >= 1
    out_dtype = x.dtype if out_dtype is None else jnp.dtype(out_dtype)
    n_parts = 2 * n_freqs + 1
    out_channels = C * n_parts
    freq_bands = make_freq_bands(n_freqs, logscale)

    total = B * C
    # Don't over-pad tiny inputs: shrink the lane width to what the data needs.
    lanes = min(lanes, max(128, pl.cdiv(total, 128) * 128))

    sub = max(_sublane_granule(x.dtype), _sublane_granule(out_dtype))
    rows = pl.cdiv(total, lanes)

    # Block rows sized so the per-step OUTPUT block stays under block_out_bytes
    # (double-buffered by the pipeline; input block is n_parts x smaller).
    out_row_bytes = n_parts * lanes * jnp.dtype(out_dtype).itemsize
    block_r = max(sub, (block_out_bytes // out_row_bytes) // sub * sub)
    block_r = min(block_r, pl.cdiv(rows, sub) * sub)       # never exceed data
    # Guarantee >= 2 grid steps when there's enough data so "parallel" shards
    # across v7x's two TensorCores (v5e/v6e are single-TC; harmless there).
    if rows > sub and rows <= block_r:
        block_r = max(sub, pl.cdiv(pl.cdiv(rows, 2), sub) * sub)

    rows_pad = pl.cdiv(rows, block_r) * block_r
    grid = (rows_pad // block_r,)

    # Flatten + pad the (small) input: a single jnp.pad, no zeros+scatter.
    xf = jnp.pad(x.reshape(-1), (0, rows_pad * lanes - total))
    x2 = xf.reshape(rows_pad, lanes)

    kernel = functools.partial(
        _embedding_kernel, freq_bands=freq_bands, logscale=logscale,
        reseed_every=reseed_every)

    out3 = pl.pallas_call(
        kernel,
        out_shape=jax.ShapeDtypeStruct((n_parts, rows_pad, lanes), out_dtype),
        grid_spec=pltpu.PrefetchScalarGridSpec(
            num_scalar_prefetch=0,
            grid=grid,
            in_specs=[pl.BlockSpec((block_r, lanes), lambda i: (i, 0))],
            out_specs=pl.BlockSpec((n_parts, block_r, lanes),
                                   lambda i: (0, i, 0)),
        ),
        compiler_params=pltpu.CompilerParams(
            dimension_semantics=("parallel",),
            vmem_limit_bytes=32 * 1024 * 1024,
        ),
    )(x2)

    # Undo the flattening: plane-major (n_parts, B, C).  Padded tail (sin(0)=0,
    # cos(0)=1 on zero padding) is sliced off here.
    parts = out3.reshape(n_parts, rows_pad * lanes)[:, :total].reshape(n_parts, B, C)
    if layout == "planes":
        return parts
    # TODO(synk): in a fused NeRF pipeline, return layout="planes" and fold this
    # permutation into the first MLP matmul (permuted weight rows); done here in
    # XLA only to reproduce the standalone PyTorch (B, out_channels) layout.
    return jnp.transpose(parts, (1, 0, 2)).reshape(B, out_channels)


def embedding_reference(x, n_freqs: int, logscale: bool = True):
    """Pure-JAX reference mirroring the PyTorch forward."""
    out = [x]
    for f in make_freq_bands(n_freqs, logscale):
        out.append(jnp.sin(f * x))
        out.append(jnp.cos(f * x))
    return jnp.concatenate(out, axis=-1)


if __name__ == "__main__":
    key = jax.random.PRNGKey(0)
    B, C = 16, 3  # small xyz batch, as in the module (3 channels)
    x = jax.random.uniform(key, (B, C), dtype=jnp.float32, minval=-1.0, maxval=1.0)

    # logscale bands, N_freqs=4
    out = jax.block_until_ready(embedding_forward(x, 4, logscale=True))
    ref = embedding_reference(x, 4, logscale=True)
    assert out.shape == (B, C * (2 * 4 + 1)), out.shape
    assert jnp.allclose(out, ref, atol=1e-5, rtol=1e-5), "logscale N=4 mismatch"

    # logscale bands, N_freqs=10 (typical NeRF xyz): exercises the re-seeded
    # double-angle recurrence at the largest bands (f=512).
    out10 = jax.block_until_ready(embedding_forward(x, 10, logscale=True))
    ref10 = embedding_reference(x, 10, logscale=True)
    assert out10.shape == (B, C * (2 * 10 + 1)), out10.shape
    assert jnp.allclose(out10, ref10, atol=2e-5, rtol=1e-5), "logscale N=10 mismatch"

    # linear bands, N_freqs=4: exercises the angle-addition recurrence.
    out_lin = jax.block_until_ready(embedding_forward(x, 4, logscale=False))
    ref_lin = embedding_reference(x, 4, logscale=False)
    assert jnp.allclose(out_lin, ref_lin, atol=1e-5, rtol=1e-5), "linear-band mismatch"

    # bf16 output knob (halves HBM write bytes; main win on v5e).
    out_bf16 = jax.block_until_ready(
        embedding_forward(x, 4, logscale=True, out_dtype=jnp.bfloat16))
    assert out_bf16.dtype == jnp.bfloat16
    assert jnp.allclose(out_bf16.astype(jnp.float32), ref, atol=2e-2, rtol=2e-2), \
        "bf16-output mismatch"

    print("KERNEL_OK")
</pallas_src>

<mosaic_0001>
module attributes {stable_mosaic.version = 11 : i64} {
  func.func @_embedding_kernel(%arg0: i32, %arg1: memref<8x128xf32, #tpu.memory_space<vmem>>, %arg2: memref<9x8x128xf32, #tpu.memory_space<vmem>>) attributes {dimension_semantics = [#tpu.dimension_semantics<parallel>], iteration_bounds = array<i64: 1>, scalar_prefetch = 0 : i64, scratch_operands = 0 : i64, tpu.core_type = #tpu.core_type<tc>, window_params = [{transform_indices = @transform_0, window_bounds = array<i64: 8, 128>}, {transform_indices = @transform_1, window_bounds = array<i64: 9, 8, 128>}]} {
    %c0 = arith.constant 0 : index
    %c0_0 = arith.constant 0 : index
    %0 = vector.load %arg1[%c0, %c0_0] : memref<8x128xf32, #tpu.memory_space<vmem>>, vector<8x128xf32>
    %c0_1 = arith.constant 0 : index
    %c0_2 = arith.constant 0 : index
    %c0_3 = arith.constant 0 : index
    %1 = vector.load %arg2[%c0_1, %c0_2, %c0_3] : memref<9x8x128xf32, #tpu.memory_space<vmem>>, vector<1x8x128xf32>
    %2 = vector.shape_cast %1 : vector<1x8x128xf32> to vector<8x128xf32>
    %3 = vector.shape_cast %0 : vector<8x128xf32> to vector<1x8x128xf32>
    tpu.vector_store %arg2[%c0_1, %c0_2, %c0_3], %3 {strides = array<i32>} : memref<9x8x128xf32, #tpu.memory_space<vmem>>, vector<1x8x128xf32>,
    %4 = math.sin %0 : vector<8x128xf32>
    %5 = math.cos %0 : vector<8x128xf32>
    %c1 = arith.constant 1 : index
    %c0_4 = arith.constant 0 : index
    %c0_5 = arith.constant 0 : index
    %6 = vector.load %arg2[%c1, %c0_4, %c0_5] : memref<9x8x128xf32, #tpu.memory_space<vmem>>, vector<1x8x128xf32>
    %7 = vector.shape_cast %6 : vector<1x8x128xf32> to vector<8x128xf32>
    %8 = vector.shape_cast %4 : vector<8x128xf32> to vector<1x8x128xf32>
    tpu.vector_store %arg2[%c1, %c0_4, %c0_5], %8 {strides = array<i32>} : memref<9x8x128xf32, #tpu.memory_space<vmem>>, vector<1x8x128xf32>,
    %c2 = arith.constant 2 : index
    %c0_6 = arith.constant 0 : index
    %c0_7 = arith.constant 0 : index
    %9 = vector.load %arg2[%c2, %c0_6, %c0_7] : memref<9x8x128xf32, #tpu.memory_space<vmem>>, vector<1x8x128xf32>
    %10 = vector.shape_cast %9 : vector<1x8x128xf32> to vector<8x128xf32>
    %11 = vector.shape_cast %5 : vector<8x128xf32> to vector<1x8x128xf32>
    tpu.vector_store %arg2[%c2, %c0_6, %c0_7], %11 {strides = array<i32>} : memref<9x8x128xf32, #tpu.memory_space<vmem>>, vector<1x8x128xf32>,
    %cst = arith.constant 2.000000e+00 : f32
    %12 = vector.broadcast %cst : f32 to vector<8x128xf32>
    %13 = arith.mulf %12, %4 : vector<8x128xf32>
    %14 = arith.mulf %13, %5 : vector<8x128xf32>
    %cst_8 = arith.constant 2.000000e+00 : f32
    %15 = vector.broadcast %cst_8 : f32 to vector<8x128xf32>
    %16 = arith.mulf %15, %5 : vector<8x128xf32>
    %17 = arith.mulf %16, %5 : vector<8x128xf32>
    %cst_9 = arith.constant 1.000000e+00 : f32
    %18 = vector.broadcast %cst_9 : f32 to vector<8x128xf32>
    %19 = arith.subf %17, %18 : vector<8x128xf32>
    %c3 = arith.constant 3 : index
    %c0_10 = arith.constant 0 : index
    %c0_11 = arith.constant 0 : index
    %20 = vector.load %arg2[%c3, %c0_10, %c0_11] : memref<9x8x128xf32, #tpu.memory_space<vmem>>, vector<1x8x128xf32>
    %21 = vector.shape_cast %20 : vector<1x8x128xf32> to vector<8x128xf32>
    %22 = vector.shape_cast %14 : vector<8x128xf32> to vector<1x8x128xf32>
    tpu.vector_store %arg2[%c3, %c0_10, %c0_11], %22 {strides = array<i32>} : memref<9x8x128xf32, #tpu.memory_space<vmem>>, vector<1x8x128xf32>,
    %c4 = arith.constant 4 : index
    %c0_12 = arith.constant 0 : index
    %c0_13 = arith.constant 0 : index
    %23 = vector.load %arg2[%c4, %c0_12, %c0_13] : memref<9x8x128xf32, #tpu.memory_space<vmem>>, vector<1x8x128xf32>
    %24 = vector.shape_cast %23 : vector<1x8x128xf32> to vector<8x128xf32>
    %25 = vector.shape_cast %19 : vector<8x128xf32> to vector<1x8x128xf32>
    tpu.vector_store %arg2[%c4, %c0_12, %c0_13], %25 {strides = array<i32>} : memref<9x8x128xf32, #tpu.memory_space<vmem>>, vector<1x8x128xf32>,
    %cst_14 = arith.constant 2.000000e+00 : f32
    %26 = vector.broadcast %cst_14 : f32 to vector<8x128xf32>
    %27 = arith.mulf %26, %14 : vector<8x128xf32>
    %28 = arith.mulf %27, %19 : vector<8x128xf32>
    %cst_15 = arith.constant 2.000000e+00 : f32
    %29 = vector.broadcast %cst_15 : f32 to vector<8x128xf32>
    %30 = arith.mulf %29, %19 : vector<8x128xf32>
    %31 = arith.mulf %30, %19 : vector<8x128xf32>
    %cst_16 = arith.constant 1.000000e+00 : f32
    %32 = vector.broadcast %cst_16 : f32 to vector<8x128xf32>
    %33 = arith.subf %31, %32 : vector<8x128xf32>
    %c5 = arith.constant 5 : index
    %c0_17 = arith.constant 0 : index
    %c0_18 = arith.constant 0 : index
    %34 = vector.load %arg2[%c5, %c0_17, %c0_18] : memref<9x8x128xf32, #tpu.memory_space<vmem>>, vector<1x8x128xf32>
    %35 = vector.shape_cast %34 : vector<1x8x128xf32> to vector<8x128xf32>
    %36 = vector.shape_cast %28 : vector<8x128xf32> to vector<1x8x128xf32>
    tpu.vector_store %arg2[%c5, %c0_17, %c0_18], %36 {strides = array<i32>} : memref<9x8x128xf32, #tpu.memory_space<vmem>>, vector<1x8x128xf32>,
    %c6 = arith.constant 6 : index
    %c0_19 = arith.constant 0 : index
    %c0_20 = arith.constant 0 : index
    %37 = vector.load %arg2[%c6, %c0_19, %c0_20] : memref<9x8x128xf32, #tpu.memory_space<vmem>>, vector<1x8x128xf32>
    %38 = vector.shape_cast %37 : vector<1x8x128xf32> to vector<8x128xf32>
    %39 = vector.shape_cast %33 : vector<8x128xf32> to vector<1x8x128xf32>
    tpu.vector_store %arg2[%c6, %c0_19, %c0_20], %39 {strides = array<i32>} : memref<9x8x128xf32, #tpu.memory_space<vmem>>, vector<1x8x128xf32>,
    %cst_21 = arith.constant 2.000000e+00 : f32
    %40 = vector.broadcast %cst_21 : f32 to vector<8x128xf32>
    %41 = arith.mulf %40, %28 : vector<8x128xf32>
    %42 = arith.mulf %41, %33 : vector<8x128xf32>
    %cst_22 = arith.constant 2.000000e+00 : f32
    %43 = vector.broadcast %cst_22 : f32 to vector<8x128xf32>
    %44 = arith.mulf %43, %33 : vector<8x128xf32>
    %45 = arith.mulf %44, %33 : vector<8x128xf32>
    %cst_23 = arith.constant 1.000000e+00 : f32
    %46 = vector.broadcast %cst_23 : f32 to vector<8x128xf32>
    %47 = arith.subf %45, %46 : vector<8x128xf32>
    %c7 = arith.constant 7 : index
    %c0_24 = arith.constant 0 : index
    %c0_25 = arith.constant 0 : index
    %48 = vector.load %arg2[%c7, %c0_24, %c0_25] : memref<9x8x128xf32, #tpu.memory_space<vmem>>, vector<1x8x128xf32>
    %49 = vector.shape_cast %48 : vector<1x8x128xf32> to vector<8x128xf32>
    %50 = vector.shape_cast %42 : vector<8x128xf32> to vector<1x8x128xf32>
    tpu.vector_store %arg2[%c7, %c0_24, %c0_25], %50 {strides = array<i32>} : memref<9x8x128xf32, #tpu.memory_space<vmem>>, vector<1x8x128xf32>,
    %c8 = arith.constant 8 : index
    %c0_26 = arith.constant 0 : index
    %c0_27 = arith.constant 0 : index
    %51 = vector.load %arg2[%c8, %c0_26, %c0_27] : memref<9x8x128xf32, #tpu.memory_space<vmem>>, vector<1x8x128xf32>
    %52 = vector.shape_cast %51 : vector<1x8x128xf32> to vector<8x128xf32>
    %53 = vector.shape_cast %47 : vector<8x128xf32> to vector<1x8x128xf32>
    tpu.vector_store %arg2[%c8, %c0_26, %c0_27], %53 {strides = array<i32>} : memref<9x8x128xf32, #tpu.memory_space<vmem>>, vector<1x8x128xf32>,
    return
  }
  func.func @transform_0(%arg0: i32) -> (i32, i32) {
    %c0_i32 = arith.constant 0 : i32
    %c0_i32_0 = arith.constant 0 : i32
    return %arg0, %c0_i32 : i32, i32
  }
  func.func @transform_1(%arg0: i32) -> (i32, i32, i32) {
    %c0_i32 = arith.constant 0 : i32
    %c0_i32_0 = arith.constant 0 : i32
    %c0_i32_1 = arith.constant 0 : i32
    return %c0_i32, %arg0, %c0_i32_0 : i32, i32, i32
  }
}

</mosaic_0001>

<llo_original>
// kernel: tpu_custom_call.1
$region0: #{tpu_custom_call.1}
  #allocation0 [shape = 'u32[]', space=smem, size = 0x4, offset = 0x4, fixed_abs, tag = 'smem constant byte address 0x4 - core index']
  #allocation1 [shape = 'u32[144,128]{1,0:T(1,128)}', space=vmem, size = 0x12000, scoped, tag = 'internal scratch']
  %s0 = inlined_call_operand.hbm [shape: f32[8,128], index: 0, kind: input, shape index: {}]
  %s1 = inlined_call_operand.hbm [shape: f32[9,8,128], index: 1, kind: output, shape index: {}]
  %s2 = sld [smem:[#allocation0]]
  $region18: #{tpu_custom_call.1} parent=0
    _
  %s4 = ssub.s32 1, %s2
  %s5 = scalar_select 0, %s4, %s2
  $region1: #{tpu_custom_call.1} parent=0
    #allocation2 [shape = 'u8[4096]{0}', space=vmem, size = 0x1000, scoped, tag = 'input window, operand 0, single buffered']
    #allocation3 [shape = 's32[1]{0}', space=sflag, size = 0x4, scoped, tag = 'scoped memory for tpu_custom_call.1']
    #allocation4 [shape = 's32[1]{0}', space=sflag, size = 0x4, scoped, tag = 'scoped memory for tpu_custom_call.1']
    #allocation5 [shape = 'u8[36864]{0}', space=vmem, size = 0x9000, scoped, tag = 'output window, operand 0, single buffered']
    %6 = vsyncpa [#allocation3], 0
    %7 = vsyncpa [#allocation4], 0
    // Predicated region
    $region2: #{tpu_custom_call.1} parent=1 // pred_check
      _
    $region3: #{tpu_custom_call.1} parent=1 // pred_check_branch
      %9 = sbr.rel (0) target = $region5
    $region4: #{tpu_custom_call.1} parent=1 // pred_region
      %s11 = ssub.s32 128, 128
      %12 = vsyncadd [#allocation3], %s11
      %s14 = sshll.u32 [#allocation2], 4
      %s15 = int_to_ptr.vmem [resolvable:$true] %s14
      %17 = dma.hbm_to_vmem [thread:$0]  %s0, 128, %s15, [#allocation3]
    $region5: #{tpu_custom_call.1} parent=1 // pred_fallthru
      _
    // Predicated region
    $region6: #{tpu_custom_call.1} parent=1 // pred_check
      _
    $region7: #{tpu_custom_call.1} parent=1 // pred_check_branch
      %19 = sbr.rel (0) target = $region9
    $region8: #{tpu_custom_call.1} parent=1 // pred_region
      %20 = dma.done [#allocation3], 128
    $region9: #{tpu_custom_call.1} parent=1 // pred_fallthru
      _
    %v21 = vld [vmem:[#allocation2] sm:$0xff]
    %22 = vst [vmem:[#allocation5] sm:$0xff] %v21
    %v23 = vand.u32 2147483647, %v21
    %vm24 = vcmp.le.f32.partialorder %v23, 0.7853982
    %vm25 = vcmp.lt.s32.totalorder %v21, 0
    %v26 = vand.u32 %v21, 2139095040
    %v27 = vshrl.u32 %v26, 23
    %v28 = vsub.s32 %v27, 127
    %v29 = vand.u32 2147483647, %v21
    %v30 = vand.u32 %v29, 8388607
    %v31 = vor.u32 %v30, 8388608
    %v32 = vsub.s32 0, %v31
    %v33 = vadd.s32 %v28, 1
    %vm34 = vcmp.gt.s32.totalorder %v33, 0
    %v35 = vsel %vm34, %v33, 0
    %v36 = vshrl.u32 %v35, 5
    %v37 = vand.u32 %v35, 31
    %v38 = vsub.s32 32, %v37
    %v39 = vshrl.u32 683565275, %v38
    %v40 = vshll.u32 683565275, %v37
    %v41 = vshrl.u32 2475754826, %v38
    %v42 = vor.u32 %v40, %v41
    %v43 = vshll.u32 2475754826, %v37
    %v44 = vshrl.u32 2131351028, %v38
    %v45 = vor.u32 %v43, %v44
    %v46 = vshll.u32 2131351028, %v37
    %v47 = vshrl.u32 2102212464, %v38
    %v48 = vor.u32 %v46, %v47
    %v49 = vshll.u32 2102212464, %v37
    %v50 = vshrl.u32 920167782, %v38
    %v51 = vor.u32 %v49, %v50
    %v52 = vshll.u32 920167782, %v37
    %v53 = vshrl.u32 1326507024, %v38
    %v54 = vor.u32 %v52, %v53
    %vm55 = vcmp.lt.s32.totalorder %v36, 1
    %vm56 = vcmp.lt.s32.totalorder %v36, 2
    %vm57 = vcmp.lt.s32.totalorder %v36, 3
    %vm58 = vcmp.lt.s32.totalorder %v36, 4
    %v59 = vsel %vm55, %v39, %v42
    %v60 = vsel %vm58, %v48, 2102212464
    %v61 = vsel %vm57, %v45, %v60
    %v62 = vsel %vm56, %v59, %v61
    %v63 = vsel %vm55, %v42, %v45
    %v64 = vsel %vm58, %v51, 920167782
    %v65 = vsel %vm57, %v48, %v64
    %v66 = vsel %vm56, %v63, %v65
    %v67 = vsel %vm55, %v45, %v48
    %v68 = vsel %vm58, %v54, 1326507024
    %v69 = vsel %vm57, %v51, %v68
    %v70 = vsel %vm56, %v67, %v69
    %v71 = vshll.u32 %v31, 8
    %v72 = vmul.u32.u64.compose %v71, %v70
    %v73 = vextract.low.u32 %v72
    %v74 = vextract.high.u32 %v72
    %v75 = vmul.u32.u64.compose %v71, %v66
    %v76 = vextract.low.u32 %v75
    %v77 = vextract.high.u32 %v75
    %v78 = vmul.u32 %v71, %v62
    %v79 = vadd.s32 %v74, %v76
    %vm80 = vc.u32 %v74, %v76
    %v81 = vadd.s32 %v77, 1
    %v82 = vsel %vm80, %v81, %v77
    %v83 = vadd.s32 %v78, %v82
    %v84 = vadd.s32 %v83, 536870912
    %v85 = vshrl.u32 %v84, 30
    %v86 = vshll.u32 %v85, 30
    %v87 = vsub.s32 %v83, %v86
    %vm88 = vcmp.lt.s32.totalorder %v87, 0
    %v89 = vsub.s32 0, %v87
    %v90 = vsel %vm88, %v89, %v87
    %v91 = vclz %v90
    %v92 = vsub.s32 %v91, 2
    %vm93 = vcmp.gt.s32.totalorder 0, %v92
    %v94 = vsel %vm93, 0, %v92
    %v95 = vsub.s32 32, %v94
    %v96 = vshll.u32 %v87, %v94
    %v97 = vshrl.u32 %v79, %v95
    %v98 = vor.u32 %v96, %v97
    %v99 = vsub.s32 4294967266, %v94
    %v100 = vadd.s32 %v99, 127
    %v101 = vshll.u32 %v100, 23
    %v102 = vor.u32 4788187, %v101
    %v103 = vand.u32 2147483647, %v102
    %v105 = vcvt.s32.f32 %v98
    %v106 = vmul.f32 %v105, %v103
    %v107 = vxor.u32 %v106, 2147483648
    %v108 = vsel %vm25, %v107, %v106
    %v109 = vsub.s32 4, %v85
    %v110 = vsel %vm25, %v109, %v85
    %v111 = vsel %vm24, %v21, %v108
    %v112 = vsel %vm24, 0, %v110
    %v113 = vcosq.f32.pop %v111
    %v114 = vsinq.f32.pop %v111
    %vm115 = vweird.f32 %v21
    %v116 = vadd.s32 %v112, 3
    %v117 = vand.u32 %v116, 3
    %vm118 = vcmp.lt.s32.totalorder %v117, 2
    %vm119 = vcmp.eq.s32.totalorder %v117, 0
    %v120 = vxor.u32 %v114, 2147483648
    %v121 = vsel %vm119, %v113, %v120
    %vm122 = vcmp.eq.s32.totalorder %v117, 2
    %v123 = vxor.u32 %v113, 2147483648
    %v124 = vsel %vm122, %v123, %v114
    %v125 = vsel %vm118, %v121, %v124
    %v126 = vsel %vm115, nan, %v125
    %v127 = vand.u32 2147483647, %v21
    %vm128 = vcmp.le.f32.partialorder %v127, 0.7853982
    %vm129 = vcmp.lt.s32.totalorder %v21, 0
    %v130 = vand.u32 %v21, 2139095040
    %v131 = vshrl.u32 %v130, 23
    %v132 = vsub.s32 %v131, 127
    %v133 = vand.u32 2147483647, %v21
    %v134 = vand.u32 %v133, 8388607
    %v135 = vor.u32 %v134, 8388608
    %v136 = vsub.s32 0, %v135
    %v137 = vadd.s32 %v132, 1
    %vm138 = vcmp.gt.s32.totalorder %v137, 0
    %v139 = vsel %vm138, %v137, 0
    %v140 = vshrl.u32 %v139, 5
    %v141 = vand.u32 %v139, 31
    %v142 = vsub.s32 32, %v141
    %v143 = vshrl.u32 683565275, %v142
    %v144 = vshll.u32 683565275, %v141
    %v145 = vshrl.u32 2475754826, %v142
    %v146 = vor.u32 %v144, %v145
    %v147 = vshll.u32 2475754826, %v141
    %v148 = vshrl.u32 2131351028, %v142
    %v149 = vor.u32 %v147, %v148
    %v150 = vshll.u32 2131351028, %v141
    %v151 = vshrl.u32 2102212464, %v142
    %v152 = vor.u32 %v150, %v151
    %v153 = vshll.u32 2102212464, %v141
    %v154 = vshrl.u32 920167782, %v142
    %v155 = vor.u32 %v153, %v154
    %v156 = vshll.u32 920167782, %v141
    %v157 = vshrl.u32 1326507024, %v142
    %v158 = vor.u32 %v156, %v157
    %vm159 = vcmp.lt.s32.totalorder %v140, 1
    %vm160 = vcmp.lt.s32.totalorder %v140, 2
    %vm161 = vcmp.lt.s32.totalorder %v140, 3
    %vm162 = vcmp.lt.s32.totalorder %v140, 4
    %v163 = vsel %vm159, %v143, %v146
    %v164 = vsel %vm162, %v152, 2102212464
    %v165 = vsel %vm161, %v149, %v164
    %v166 = vsel %vm160, %v163, %v165
    %v167 = vsel %vm159, %v146, %v149
    %v168 = vsel %vm162, %v155, 920167782
    %v169 = vsel %vm161, %v152, %v168
    %v170 = vsel %vm160, %v167, %v169
    %v171 = vsel %vm159, %v149, %v152
    %v172 = vsel %vm162, %v158, 1326507024
    %v173 = vsel %vm161, %v155, %v172
    %v174 = vsel %vm160, %v171, %v173
    %v175 = vshll.u32 %v135, 8
    %v176 = vmul.u32.u64.compose %v175, %v174
    %v177 = vextract.low.u32 %v176
    %v178 = vextract.high.u32 %v176
    %v179 = vmul.u32.u64.compose %v175, %v170
    %v180 = vextract.low.u32 %v179
    %v181 = vextract.high.u32 %v179
    %v182 = vmul.u32 %v175, %v166
    %v183 = vadd.s32 %v178, %v180
    %vm184 = vc.u32 %v178, %v180
    %v185 = vadd.s32 %v181, 1
    %v186 = vsel %vm184, %v185, %v181
    %v187 = vadd.s32 %v182, %v186
    %v188 = vadd.s32 %v187, 536870912
    %v189 = vshrl.u32 %v188, 30
    %v190 = vshll.u32 %v189, 30
    %v191 = vsub.s32 %v187, %v190
    %vm192 = vcmp.lt.s32.totalorder %v191, 0
    %v193 = vsub.s32 0, %v191
    %v194 = vsel %vm192, %v193, %v191
    %v195 = vclz %v194
    %v196 = vsub.s32 %v195, 2
    %vm197 = vcmp.gt.s32.totalorder 0, %v196
    %v198 = vsel %vm197, 0, %v196
    %v199 = vsub.s32 32, %v198
    %v200 = vshll.u32 %v191, %v198
    %v201 = vshrl.u32 %v183, %v199
    %v202 = vor.u32 %v200, %v201
    %v203 = vsub.s32 4294967266, %v198
    %v204 = vadd.s32 %v203, 127
    %v205 = vshll.u32 %v204, 23
    %v206 = vor.u32 4788187, %v205
    %v207 = vand.u32 2147483647, %v206
    %v209 = vcvt.s32.f32 %v202
    %v210 = vmul.f32 %v209, %v207
    %v211 = vxor.u32 %v210, 2147483648
    %v212 = vsel %vm129, %v211, %v210
    %v213 = vsub.s32 4, %v189
    %v214 = vsel %vm129, %v213, %v189
    %v215 = vsel %vm128, %v21, %v212
    %v216 = vsel %vm128, 0, %v214
    %v217 = vcosq.f32.pop %v215
    %v218 = vsinq.f32.pop %v215
    %vm219 = vweird.f32 %v21
    %v220 = vand.u32 %v216, 3
    %vm221 = vcmp.lt.s32.totalorder %v220, 2
    %vm222 = vcmp.eq.s32.totalorder %v220, 0
    %v223 = vxor.u32 %v218, 2147483648
    %v224 = vsel %vm222, %v217, %v223
    %vm225 = vcmp.eq.s32.totalorder %v220, 2
    %v226 = vxor.u32 %v217, 2147483648
    %v227 = vsel %vm225, %v226, %v218
    %v228 = vsel %vm221, %v224, %v227
    %v229 = vsel %vm219, nan, %v228
    %s230 = scalar_lea.vmem [#allocation5], 8
    %231 = vst [vmem:[%s230] sm:$0xff] %v126
    %s232 = scalar_lea.vmem [#allocation5], 16
    %233 = vst [vmem:[%s232] sm:$0xff] %v229
    %v234 = vmul.f32 %v126, 2.0
    %v235 = vmul.f32 %v234, %v229
    %v236 = vmul.f32 %v229, 2.0
    %v237 = vmul.f32 %v236, %v229
    %v238 = vsub.f32 %v237, 1.0
    %s239 = scalar_lea.vmem [#allocation5], 24
    %240 = vst [vmem:[%s239] sm:$0xff] %v235
    %s241 = scalar_lea.vmem [#allocation5], 32
    %242 = vst [vmem:[%s241] sm:$0xff] %v238
    %v243 = vmul.f32 %v235, 2.0
    %v244 = vmul.f32 %v243, %v238
    %v245 = vmul.f32 %v238, 2.0
    %v246 = vmul.f32 %v245, %v238
    %v247 = vsub.f32 %v246, 1.0
    %s248 = scalar_lea.vmem [#allocation5], 40
    %249 = vst [vmem:[%s248] sm:$0xff] %v244
    %s250 = scalar_lea.vmem [#allocation5], 48
    %251 = vst [vmem:[%s250] sm:$0xff] %v247
    %v252 = vmul.f32 %v244, 2.0
    %v253 = vmul.f32 %v252, %v247
    %v254 = vmul.f32 %v247, 2.0
    %v255 = vmul.f32 %v254, %v247
    %v256 = vsub.f32 %v255, 1.0
    %s257 = scalar_lea.vmem [#allocation5], 56
    %258 = vst [vmem:[%s257] sm:$0xff] %v253
    %s259 = scalar_lea.vmem [#allocation5], 64
    %260 = vst [vmem:[%s259] sm:$0xff] %v256
    // Predicated region
    $region10: #{tpu_custom_call.1} parent=1 // pred_check
      _
    $region11: #{tpu_custom_call.1} parent=1 // pred_check_branch
      %262 = sbr.rel (0) target = $region13
    $region12: #{tpu_custom_call.1} parent=1 // pred_region
      %s264 = ssub.s32 1152, 1152
      %265 = vsyncadd [#allocation4], %s264
      %s266 = sshll.u32 [#allocation5], 4
      %s267 = int_to_ptr.vmem [resolvable:$true] %s266
      %272 = dma.vmem_to_hbm [thread:$0]  %s267, 1152, %s1, [#allocation4], 128, 128, 8
    $region13: #{tpu_custom_call.1} parent=1 // pred_fallthru
      _
    // Predicated region
    $region14: #{tpu_custom_call.1} parent=1 // pred_check
      _
    $region15: #{tpu_custom_call.1} parent=1 // pred_check_branch
      %274 = sbr.rel (0) target = $region17
    $region16: #{tpu_custom_call.1} parent=1 // pred_region
      %275 = dma.done [#allocation4], 1152
    $region17: #{tpu_custom_call.1} parent=1 // pred_fallthru
      _
    %276 = vsyncpa [#allocation3], 1
    %277 = vsyncpa [#allocation4], 1

</llo_original>
